<compile_context>
chip_gen: v7x
topology: tpu7x:2x2x1
jax: 0.10.0
libtpu: 0.0.40
codegen_flags: <defaults>
</compile_context>

<pallas_src>
import jax
import jax.numpy as jnp
from jax.experimental import pallas as pl
from jax.experimental.pallas import tpu as pltpu


def _round_up(x, m):
    return ((x + m - 1) // m) * m


def _sublane_min(dtype):
    # Minimum second-minor tile per element width: f32 -> 8, bf16 -> 16, int8/fp8 -> 32.
    return {4: 8, 2: 16, 1: 32}.get(jnp.dtype(dtype).itemsize, 8)


def _lane_pad(dim):
    # Lane-dense (multiple of 128); bump small dims to 256 so the 2x256x256
    # MXU on v6e/v7x runs full-width. 256 is still a multiple of 128 on v5e.
    return max(_round_up(max(dim, 1), 128), 256)


def _vmem_capacity_bytes():
    try:
        return int(pltpu.get_tpu_info().vmem_capacity_bytes)
    except Exception:
        return 64 * 1024 * 1024  # v7x per-TC VMEM — safe lower bound everywhere.


def _mlp_kernel(x_ref, w1_ref, b1_ref, w2_ref, b2_ref, o_ref):
    # x:  (TB, Kp)   native dtype (pipelined tile)
    # w1: (Kp, Kp)   native dtype, resident
    # b1: (1, Kp)    f32, resident
    # w2: (Kp, Np)   native dtype, resident
    # b2: (1, Np)    f32, resident
    x = x_ref[...]

    # Linear 1 (MXU in native dtype, f32 accumulate) + bias (already f32).
    h = jnp.dot(x, w1_ref[...], preferred_element_type=jnp.float32)
    h = h + b1_ref[...]

    # LeakyReLU (PyTorch default negative_slope = 0.01): single select.
    h = jnp.where(h >= 0, h, 0.01 * h)

    # Linear 2 — feed the MXU in the native (possibly bf16) dtype again.
    y = jnp.dot(h.astype(x.dtype), w2_ref[...],
                preferred_element_type=jnp.float32)
    y = y + b2_ref[...]

    o_ref[...] = y.astype(o_ref.dtype)


def classification_layer_forward(x, w1, b1, w2, b2, *, tb=256):
    """x: (B, C_in); w1: (C_in, C_in); b1: (C_in,); w2: (C_in, C_out); b2: (C_out,)."""
    B, C_in = x.shape
    C_out = w2.shape[1]
    dtype = x.dtype
    itemsize = jnp.dtype(dtype).itemsize

    # ---- lane-dense K and N (zero-padded; exact zeros contribute nothing) ----
    k_pad = _lane_pad(C_in)
    n_pad = _lane_pad(C_out)

    w1p = jnp.pad(w1, ((0, k_pad - C_in), (0, k_pad - C_in)))
    w2p = jnp.pad(w2, ((0, k_pad - C_in), (0, n_pad - C_out)))
    b1p = jnp.pad(b1, (0, k_pad - C_in)).astype(jnp.float32).reshape(1, k_pad)
    b2p = jnp.pad(b2, (0, n_pad - C_out)).astype(jnp.float32).reshape(1, n_pad)

    # ---- batch tile selection -------------------------------------------------
    sub = _sublane_min(dtype)               # bf16 needs >=16 sublanes, int8 >=32
    TB = min(tb, _round_up(B, sub))
    TB = _round_up(TB, sub)

    vmem_cap = int(0.85 * _vmem_capacity_bytes())

    def vmem_needed(tb_, weight_bufs):
        weight = weight_bufs * ((k_pad * k_pad + k_pad * n_pad) * itemsize
                                + (k_pad + n_pad) * 4)
        acts = 2 * tb_ * k_pad * itemsize + 2 * tb_ * n_pad * itemsize  # 2x-buffered x / out tiles
        scratch = tb_ * k_pad * 4 + tb_ * n_pad * 4 + tb_ * k_pad * itemsize  # f32 h, f32 y, h cast
        return int((weight + acts + scratch) * 1.2) + (2 << 20)

    # Shrink TB until the (single-buffered-weight) plan fits the VMEM budget.
    while vmem_needed(TB, 1) > vmem_cap and TB > sub:
        TB = max(sub, _round_up(TB // 2, sub))

    # TODO(synk): for very large C_in/C_out where the resident weights alone
    # exceed the VMEM budget, switch to K/N-tiled matmul grids with an f32
    # accumulator instead of the weight-resident plan below.

    B_pad = _round_up(B, TB)
    xk = jnp.pad(x, ((0, B_pad - B), (0, k_pad - C_in)))
    grid = (B_pad // TB,)

    def run(weight_mode, weight_bufs):
        vmem_limit = int(min(max(vmem_needed(TB, weight_bufs),
                                 32 * 1024 * 1024), vmem_cap))
        kw = {} if weight_mode is None else {"pipeline_mode": weight_mode}
        in_specs = [
            pl.BlockSpec((TB, k_pad), lambda i: (i, 0)),           # x tile (pipelined)
            pl.BlockSpec((k_pad, k_pad), lambda i: (0, 0), **kw),  # w1 (resident)
            pl.BlockSpec((1, k_pad), lambda i: (0, 0), **kw),      # b1 (resident, f32)
            pl.BlockSpec((k_pad, n_pad), lambda i: (0, 0), **kw),  # w2 (resident)
            pl.BlockSpec((1, n_pad), lambda i: (0, 0), **kw),      # b2 (resident, f32)
        ]
        out_spec = pl.BlockSpec((TB, n_pad), lambda i: (i, 0))     # lane-dense output
        return pl.pallas_call(
            _mlp_kernel,
            out_shape=jax.ShapeDtypeStruct((B_pad, n_pad), dtype),
            grid_spec=pltpu.PrefetchScalarGridSpec(
                num_scalar_prefetch=0,
                grid=grid,
                in_specs=in_specs,
                out_specs=out_spec,
            ),
            compiler_params=pltpu.CompilerParams(
                dimension_semantics=("parallel",),
                vmem_limit_bytes=vmem_limit,
            ),
        )(xk, w1p, b1p, w2p, b2p)

    try:
        # Single-buffer the constant-index resident weights: halves their VMEM
        # footprint (they never change across grid steps).
        out = run(pl.Buffered(1), 1)
    except Exception:
        # Conservative fallback if Buffered(1) is rejected by this jax build.
        out = run(None, 2)

    # Slice off batch padding and lane padding.
    return out[:B, :C_out]


def init_params(key, in_channel, out_channel, dtype=jnp.float32):
    """Deterministic init mimicking PyTorch's Linear default (uniform +/-1/sqrt(fan_in)).

    PyTorch stores Linear weights as (out, in); we store pre-transposed (in, out)
    so the kernel computes x @ W directly.
    """
    k1, k2, k3, k4 = jax.random.split(key, 4)
    bound = 1.0 / jnp.sqrt(in_channel)
    w1 = jax.random.uniform(k1, (in_channel, in_channel), dtype,
                            minval=-bound, maxval=bound)
    b1 = jax.random.uniform(k2, (in_channel,), dtype,
                            minval=-bound, maxval=bound)
    w2 = jax.random.uniform(k3, (in_channel, out_channel), dtype,
                            minval=-bound, maxval=bound)
    b2 = jax.random.uniform(k4, (out_channel,), dtype,
                            minval=-bound, maxval=bound)
    return w1, b1, w2, b2


def _reference(x, w1, b1, w2, b2):
    h = jnp.dot(x.astype(jnp.float32), w1.astype(jnp.float32)) + b1.astype(jnp.float32)
    h = jnp.where(h >= 0, h, 0.01 * h)
    y = jnp.dot(h, w2.astype(jnp.float32)) + b2.astype(jnp.float32)
    return y


if __name__ == "__main__":
    key = jax.random.PRNGKey(0)
    kx, kp = jax.random.split(key)

    # Small shapes consistent with the module: x (B, C_in) -> (B, C_out).
    B, C_in, C_out = 8, 32, 10
    x = jax.random.normal(kx, (B, C_in), jnp.float32)
    w1, b1, w2, b2 = init_params(kp, C_in, C_out)

    out = jax.block_until_ready(classification_layer_forward(x, w1, b1, w2, b2))
    ref = _reference(x, w1, b1, w2, b2)
    assert out.shape == (B, C_out)
    assert jnp.allclose(out, ref.astype(out.dtype), atol=1e-5, rtol=1e-5), \
        "mismatch vs reference"

    # Also exercise the tiled / padded path: non-multiple batch + bf16 params
    # (full-rate MXU path with f32 accumulation). B=300 -> B_pad=512, grid=2
    # (even — balanced across v7x's two TensorCores).
    B2 = 300
    x2 = jax.random.normal(jax.random.PRNGKey(1), (B2, C_in), jnp.bfloat16)
    w1b, b1b, w2b, b2b = (p.astype(jnp.bfloat16) for p in (w1, b1, w2, b2))
    out2 = jax.block_until_ready(
        classification_layer_forward(x2, w1b, b1b, w2b, b2b))
    ref2 = _reference(x2, w1b, b1b, w2b, b2b)
    assert out2.shape == (B2, C_out)
    assert jnp.allclose(out2.astype(jnp.float32), ref2, atol=5e-2, rtol=5e-2), \
        "bf16 mismatch vs reference"

    print("KERNEL_OK")
</pallas_src>

<mosaic_0001>
module attributes {stable_mosaic.version = 11 : i64} {
  func.func @_mlp_kernel(%arg0: i32, %arg1: memref<8x256xf32, #tpu.memory_space<vmem>>, %arg2: memref<256x256xf32, #tpu.memory_space<vmem>>, %arg3: memref<1x256xf32, #tpu.memory_space<vmem>>, %arg4: memref<256x256xf32, #tpu.memory_space<vmem>>, %arg5: memref<1x256xf32, #tpu.memory_space<vmem>>, %arg6: memref<8x256xf32, #tpu.memory_space<vmem>>) attributes {dimension_semantics = [#tpu.dimension_semantics<parallel>], iteration_bounds = array<i64: 1>, scalar_prefetch = 0 : i64, scratch_operands = 0 : i64, tpu.core_type = #tpu.core_type<tc>, window_params = [{transform_indices = @transform_0, window_bounds = array<i64: 8, 256>}, {pipeline_mode = #tpu.pipeline_mode<synchronous>, transform_indices = @transform_1, window_bounds = array<i64: 256, 256>}, {pipeline_mode = #tpu.pipeline_mode<synchronous>, transform_indices = @transform_2, window_bounds = array<i64: 1, 256>}, {pipeline_mode = #tpu.pipeline_mode<synchronous>, transform_indices = @transform_3, window_bounds = array<i64: 256, 256>}, {pipeline_mode = #tpu.pipeline_mode<synchronous>, transform_indices = @transform_4, window_bounds = array<i64: 1, 256>}, {transform_indices = @transform_5, window_bounds = array<i64: 8, 256>}]} {
    %c0 = arith.constant 0 : index
    %c0_0 = arith.constant 0 : index
    %0 = vector.load %arg1[%c0, %c0_0] : memref<8x256xf32, #tpu.memory_space<vmem>>, vector<8x256xf32>
    %c0_1 = arith.constant 0 : index
    %c0_2 = arith.constant 0 : index
    %1 = vector.load %arg2[%c0_1, %c0_2] : memref<256x256xf32, #tpu.memory_space<vmem>>, vector<256x256xf32>
    %cst = arith.constant dense<0.000000e+00> : vector<8x256xf32>
    %2 = tpu.matmul %0, %1, %cst {dimension_numbers = #tpu.dot_dimension_numbers<[1], [0], [0], [1], [0, 0, 1, 1], [], []>} : vector<8x256xf32>, vector<256x256xf32>, vector<8x256xf32> -> vector<8x256xf32>
    %c0_3 = arith.constant 0 : index
    %c0_4 = arith.constant 0 : index
    %3 = vector.load %arg3[%c0_3, %c0_4] : memref<1x256xf32, #tpu.memory_space<vmem>>, vector<1x256xf32>
    %4 = vector.broadcast %3 : vector<1x256xf32> to vector<8x256xf32>
    %5 = arith.addf %2, %4 : vector<8x256xf32>
    %cst_5 = arith.constant 0.000000e+00 : f32
    %6 = vector.broadcast %cst_5 : f32 to vector<8x256xf32>
    %7 = arith.cmpf oge, %5, %6 : vector<8x256xf32>
    %cst_6 = arith.constant 0.00999999977 : f32
    %8 = vector.broadcast %cst_6 : f32 to vector<8x256xf32>
    %9 = arith.mulf %8, %5 : vector<8x256xf32>
    %10 = arith.select %7, %5, %9 : vector<8x256xi1>, vector<8x256xf32>
    %c0_7 = arith.constant 0 : index
    %c0_8 = arith.constant 0 : index
    %11 = vector.load %arg4[%c0_7, %c0_8] : memref<256x256xf32, #tpu.memory_space<vmem>>, vector<256x256xf32>
    %cst_9 = arith.constant dense<0.000000e+00> : vector<8x256xf32>
    %12 = tpu.matmul %10, %11, %cst_9 {dimension_numbers = #tpu.dot_dimension_numbers<[1], [0], [0], [1], [0, 0, 1, 1], [], []>} : vector<8x256xf32>, vector<256x256xf32>, vector<8x256xf32> -> vector<8x256xf32>
    %c0_10 = arith.constant 0 : index
    %c0_11 = arith.constant 0 : index
    %13 = vector.load %arg5[%c0_10, %c0_11] : memref<1x256xf32, #tpu.memory_space<vmem>>, vector<1x256xf32>
    %14 = vector.broadcast %13 : vector<1x256xf32> to vector<8x256xf32>
    %15 = arith.addf %12, %14 : vector<8x256xf32>
    %c0_12 = arith.constant 0 : index
    %c0_13 = arith.constant 0 : index
    %16 = vector.load %arg6[%c0_12, %c0_13] : memref<8x256xf32, #tpu.memory_space<vmem>>, vector<8x256xf32>
    tpu.vector_store %arg6[%c0_12, %c0_13], %15 {strides = array<i32>} : memref<8x256xf32, #tpu.memory_space<vmem>>, vector<8x256xf32>,
    return
  }
  func.func @transform_0(%arg0: i32) -> (i32, i32) {
    %c0_i32 = arith.constant 0 : i32
    %c0_i32_0 = arith.constant 0 : i32
    return %arg0, %c0_i32 : i32, i32
  }
  func.func @transform_1(%arg0: i32) -> (i32, i32) {
    %c0_i32 = arith.constant 0 : i32
    %c0_i32_0 = arith.constant 0 : i32
    %c0_i32_1 = arith.constant 0 : i32
    return %c0_i32, %c0_i32_0 : i32, i32
  }
  func.func @transform_2(%arg0: i32) -> (i32, i32) {
    %c0_i32 = arith.constant 0 : i32
    %c0_i32_0 = arith.constant 0 : i32
    %c0_i32_1 = arith.constant 0 : i32
    return %c0_i32, %c0_i32_0 : i32, i32
  }
  func.func @transform_3(%arg0: i32) -> (i32, i32) {
    %c0_i32 = arith.constant 0 : i32
    %c0_i32_0 = arith.constant 0 : i32
    %c0_i32_1 = arith.constant 0 : i32
    return %c0_i32, %c0_i32_0 : i32, i32
  }
  func.func @transform_4(%arg0: i32) -> (i32, i32) {
    %c0_i32 = arith.constant 0 : i32
    %c0_i32_0 = arith.constant 0 : i32
    %c0_i32_1 = arith.constant 0 : i32
    return %c0_i32, %c0_i32_0 : i32, i32
  }
  func.func @transform_5(%arg0: i32) -> (i32, i32) {
    %c0_i32 = arith.constant 0 : i32
    %c0_i32_0 = arith.constant 0 : i32
    return %arg0, %c0_i32 : i32, i32
  }
}

module attributes {stable_mosaic.version = 11 : i64} {
  func.func @_mlp_kernel(%arg0: i32, %arg1: memref<8x256xf32, #tpu.memory_space<vmem>>, %arg2: memref<256x256xf32, #tpu.memory_space<vmem>>, %arg3: memref<1x256xf32, #tpu.memory_space<vmem>>, %arg4: memref<256x256xf32, #tpu.memory_space<vmem>>, %arg5: memref<1x256xf32, #tpu.memory_space<vmem>>, %arg6: memref<8x256xf32, #tpu.memory_space<vmem>>) attributes {dimension_semantics = [#tpu.dimension_semantics<parallel>], iteration_bounds = array<i64: 1>, scalar_prefetch = 0 : i64, scratch_operands = 0 : i64, tpu.core_type = #tpu.core_type<tc>, window_params = [{transform_indices = @transform_0, window_bounds = array<i64: 8, 256>}, {pipeline_mode = #tpu.pipeline_mode<synchronous>, transform_indices = @transform_1, window_bounds = array<i64: 256, 256>}, {pipeline_mode = #tpu.pipeline_mode<synchronous>, transform_indices = @transform_2, window_bounds = array<i64: 1, 256>}, {pipeline_mode = #tpu.pipeline_mode<synchronous>, transform_indices = @transform_3, window_bounds = array<i64: 256, 256>}, {pipeline_mode = #tpu.pipeline_mode<synchronous>, transform_indices = @transform_4, window_bounds = array<i64: 1, 256>}, {transform_indices = @transform_5, window_bounds = array<i64: 8, 256>}]} {
    %c0 = arith.constant 0 : index
    %c0_0 = arith.constant 0 : index
    %0 = vector.load %arg1[%c0, %c0_0] : memref<8x256xf32, #tpu.memory_space<vmem>>, vector<8x256xf32>
    %c0_1 = arith.constant 0 : index
    %c0_2 = arith.constant 0 : index
    %1 = vector.load %arg2[%c0_1, %c0_2] : memref<256x256xf32, #tpu.memory_space<vmem>>, vector<256x256xf32>
    %cst = arith.constant dense<0.000000e+00> : vector<8x256xf32>
    %2 = tpu.matmul %0, %1, %cst {dimension_numbers = #tpu.dot_dimension_numbers<[1], [0], [0], [1], [0, 0, 1, 1], [], []>} : vector<8x256xf32>, vector<256x256xf32>, vector<8x256xf32> -> vector<8x256xf32>
    %c0_3 = arith.constant 0 : index
    %c0_4 = arith.constant 0 : index
    %3 = vector.load %arg3[%c0_3, %c0_4] : memref<1x256xf32, #tpu.memory_space<vmem>>, vector<1x256xf32>
    %4 = vector.broadcast %3 : vector<1x256xf32> to vector<8x256xf32>
    %5 = arith.addf %2, %4 : vector<8x256xf32>
    %cst_5 = arith.constant 0.000000e+00 : f32
    %6 = vector.broadcast %cst_5 : f32 to vector<8x256xf32>
    %7 = arith.cmpf oge, %5, %6 : vector<8x256xf32>
    %cst_6 = arith.constant 0.00999999977 : f32
    %8 = vector.broadcast %cst_6 : f32 to vector<8x256xf32>
    %9 = arith.mulf %8, %5 : vector<8x256xf32>
    %10 = arith.select %7, %5, %9 : vector<8x256xi1>, vector<8x256xf32>
    %c0_7 = arith.constant 0 : index
    %c0_8 = arith.constant 0 : index
    %11 = vector.load %arg4[%c0_7, %c0_8] : memref<256x256xf32, #tpu.memory_space<vmem>>, vector<256x256xf32>
    %cst_9 = arith.constant dense<0.000000e+00> : vector<8x256xf32>
    %12 = tpu.matmul %10, %11, %cst_9 {dimension_numbers = #tpu.dot_dimension_numbers<[1], [0], [0], [1], [0, 0, 1, 1], [], []>} : vector<8x256xf32>, vector<256x256xf32>, vector<8x256xf32> -> vector<8x256xf32>
    %c0_10 = arith.constant 0 : index
    %c0_11 = arith.constant 0 : index
    %13 = vector.load %arg5[%c0_10, %c0_11] : memref<1x256xf32, #tpu.memory_space<vmem>>, vector<1x256xf32>
    %14 = vector.broadcast %13 : vector<1x256xf32> to vector<8x256xf32>
    %15 = arith.addf %12, %14 : vector<8x256xf32>
    %c0_12 = arith.constant 0 : index
    %c0_13 = arith.constant 0 : index
    %16 = vector.load %arg6[%c0_12, %c0_13] : memref<8x256xf32, #tpu.memory_space<vmem>>, vector<8x256xf32>
    tpu.vector_store %arg6[%c0_12, %c0_13], %15 {strides = array<i32>} : memref<8x256xf32, #tpu.memory_space<vmem>>, vector<8x256xf32>,
    return
  }
  func.func @transform_0(%arg0: i32) -> (i32, i32) {
    %c0_i32 = arith.constant 0 : i32
    %c0_i32_0 = arith.constant 0 : i32
    return %arg0, %c0_i32 : i32, i32
  }
  func.func @transform_1(%arg0: i32) -> (i32, i32) {
    %c0_i32 = arith.constant 0 : i32
    %c0_i32_0 = arith.constant 0 : i32
    %c0_i32_1 = arith.constant 0 : i32
    return %c0_i32, %c0_i32_0 : i32, i32
  }
  func.func @transform_2(%arg0: i32) -> (i32, i32) {
    %c0_i32 = arith.constant 0 : i32
    %c0_i32_0 = arith.constant 0 : i32
    %c0_i32_1 = arith.constant 0 : i32
    return %c0_i32, %c0_i32_0 : i32, i32
  }
  func.func @transform_3(%arg0: i32) -> (i32, i32) {
    %c0_i32 = arith.constant 0 : i32
    %c0_i32_0 = arith.constant 0 : i32
    %c0_i32_1 = arith.constant 0 : i32
    return %c0_i32, %c0_i32_0 : i32, i32
  }
  func.func @transform_4(%arg0: i32) -> (i32, i32) {
    %c0_i32 = arith.constant 0 : i32
    %c0_i32_0 = arith.constant 0 : i32
    %c0_i32_1 = arith.constant 0 : i32
    return %c0_i32, %c0_i32_0 : i32, i32
  }
  func.func @transform_5(%arg0: i32) -> (i32, i32) {
    %c0_i32 = arith.constant 0 : i32
    %c0_i32_0 = arith.constant 0 : i32
    return %arg0, %c0_i32 : i32, i32
  }
}

</mosaic_0001>

<llo_original>
// kernel: tpu_custom_call.1
$region0: #{tpu_custom_call.1}
  #allocation0 [shape = 'u32[]', space=smem, size = 0x4, offset = 0x4, fixed_abs, tag = 'smem constant byte address 0x4 - core index']
  #allocation1 [shape = 'u32[144,128]{1,0:T(1,128)}', space=vmem, size = 0x12000, scoped, tag = 'internal scratch']
  %s0 = inlined_call_operand.hbm [shape: f32[8,256], index: 0, kind: input, shape index: {}]
  %s1 = inlined_call_operand.hbm [shape: f32[256,256], index: 1, kind: input, shape index: {}]
  %s2 = inlined_call_operand.vmem [shape: f32[1,256], index: 2, kind: input, shape index: {}]
  %s3 = inlined_call_operand.hbm [shape: f32[256,256], index: 3, kind: input, shape index: {}]
  %s4 = inlined_call_operand.vmem [shape: f32[1,256], index: 4, kind: input, shape index: {}]
  %s5 = inlined_call_operand.hbm [shape: f32[8,256], index: 5, kind: output, shape index: {}]
  %s6 = sld [smem:[#allocation0]]
  $region42: #{tpu_custom_call.1} parent=0
    _
  %s8 = ssub.s32 1, %s6
  %s9 = scalar_select 0, %s8, %s6
  $region1: #{tpu_custom_call.1} parent=0
    #allocation2 [shape = 'u8[8192]{0}', space=vmem, size = 0x2000, scoped, tag = 'input window, operand 0, single buffered']
    #allocation3 [shape = 's32[1]{0}', space=sflag, size = 0x4, scoped, tag = 'scoped memory for tpu_custom_call.1']
    #allocation4 [shape = 's32[1]{0}', space=sflag, size = 0x4, scoped, tag = 'scoped memory for tpu_custom_call.1']
    #allocation5 [shape = 'u8[262144]{0}', space=vmem, size = 0x40000, scoped, tag = 'input window, operand 1, single buffered']
    #allocation6 [shape = 's32[1]{0}', space=sflag, size = 0x4, scoped, tag = 'scoped memory for tpu_custom_call.1']
    #allocation7 [shape = 'u8[262144]{0}', space=vmem, size = 0x40000, scoped, tag = 'input window, operand 3, single buffered']
    #allocation8 [shape = 'u8[8192]{0}', space=vmem, size = 0x2000, scoped, tag = 'output window, operand 0, single buffered']
    %10 = vsyncpa [#allocation3], 0
    %11 = vsyncpa [#allocation6], 0
    %12 = vsyncpa [#allocation4], 0
    // Predicated region
    $region2: #{tpu_custom_call.1} parent=1 // pred_check
      _
    $region3: #{tpu_custom_call.1} parent=1 // pred_check_branch
      %14 = sbr.rel (0) target = $region5
    $region4: #{tpu_custom_call.1} parent=1 // pred_region
      %s16 = ssub.s32 256, 256
      %17 = vsyncadd [#allocation3], %s16
      %s19 = sshll.u32 [#allocation2], 4
      %s20 = int_to_ptr.vmem [resolvable:$true] %s19
      %22 = dma.hbm_to_vmem [thread:$0]  %s0, 256, %s20, [#allocation3]
    $region5: #{tpu_custom_call.1} parent=1 // pred_fallthru
      _
    // Predicated region
    $region6: #{tpu_custom_call.1} parent=1 // pred_check
      _
    $region7: #{tpu_custom_call.1} parent=1 // pred_check_branch
      %24 = sbr.rel (0) target = $region9
    $region8: #{tpu_custom_call.1} parent=1 // pred_region
      %s26 = ssub.s32 8192, 8192
      %27 = vsyncadd [#allocation6], %s26
      %s28 = sshll.u32 [#allocation5], 4
      %s29 = int_to_ptr.vmem [resolvable:$true] %s28
      %34 = dma.hbm_to_vmem [thread:$0]  %s1, 8192, %s29, [#allocation6], 256, 256, 16
    $region9: #{tpu_custom_call.1} parent=1 // pred_fallthru
      _
    // Predicated region
    $region10: #{tpu_custom_call.1} parent=1 // pred_check
      _
    $region11: #{tpu_custom_call.1} parent=1 // pred_check_branch
      %36 = sbr.rel (0) target = $region13
    $region12: #{tpu_custom_call.1} parent=1 // pred_region
      _
    $region13: #{tpu_custom_call.1} parent=1 // pred_fallthru
      _
    // Predicated region
    $region14: #{tpu_custom_call.1} parent=1 // pred_check
      _
    $region15: #{tpu_custom_call.1} parent=1 // pred_check_branch
      %38 = sbr.rel (0) target = $region17
    $region16: #{tpu_custom_call.1} parent=1 // pred_region
      %s40 = ssub.s32 8192, 8192
      %41 = vsyncadd [#allocation6], %s40
      %s42 = sshll.u32 [#allocation7], 4
      %s43 = int_to_ptr.vmem [resolvable:$true] %s42
      %48 = dma.hbm_to_vmem [thread:$0]  %s3, 8192, %s43, [#allocation6], 256, 256, 16
    $region17: #{tpu_custom_call.1} parent=1 // pred_fallthru
      _
    // Predicated region
    $region18: #{tpu_custom_call.1} parent=1 // pred_check
      _
    $region19: #{tpu_custom_call.1} parent=1 // pred_check_branch
      %50 = sbr.rel (0) target = $region21
    $region20: #{tpu_custom_call.1} parent=1 // pred_region
      _
    $region21: #{tpu_custom_call.1} parent=1 // pred_fallthru
      _
    // Predicated region
    $region22: #{tpu_custom_call.1} parent=1 // pred_check
      _
    $region23: #{tpu_custom_call.1} parent=1 // pred_check_branch
      %52 = sbr.rel (0) target = $region25
    $region24: #{tpu_custom_call.1} parent=1 // pred_region
      %53 = dma.done [#allocation3], 256
    $region25: #{tpu_custom_call.1} parent=1 // pred_fallthru
      _
    // Predicated region
    $region26: #{tpu_custom_call.1} parent=1 // pred_check
      _
    $region27: #{tpu_custom_call.1} parent=1 // pred_check_branch
      %55 = sbr.rel (0) target = $region29
    $region28: #{tpu_custom_call.1} parent=1 // pred_region
      %56 = dma.done [#allocation6], 8192
    $region29: #{tpu_custom_call.1} parent=1 // pred_fallthru
      _
    // Predicated region
    $region30: #{tpu_custom_call.1} parent=1 // pred_check
      _
    $region31: #{tpu_custom_call.1} parent=1 // pred_check_branch
      %58 = sbr.rel (0) target = $region33
    $region32: #{tpu_custom_call.1} parent=1 // pred_region
      %59 = dma.done [#allocation6], 8192
    $region33: #{tpu_custom_call.1} parent=1 // pred_fallthru
      _
    %v60 = vld [vmem:[#allocation2] sm:$0xff]
    %v61 = vld [vmem:[#allocation2 + $0x8] sm:$0xff]
    %v62 = vld [vmem:[#allocation5] sm:$0xff]
    %v63 = vld [vmem:[#allocation5 + $0x8] sm:$0xff]
    %v64 = vld [vmem:[#allocation5 + $0x10] sm:$0xff]
    %v65 = vld [vmem:[#allocation5 + $0x18] sm:$0xff]
    %v66 = vld [vmem:[#allocation5 + $0x20] sm:$0xff]
    %v67 = vld [vmem:[#allocation5 + $0x28] sm:$0xff]
    %v68 = vld [vmem:[#allocation5 + $0x30] sm:$0xff]
    %v69 = vld [vmem:[#allocation5 + $0x38] sm:$0xff]
    %v70 = vld [vmem:[#allocation5 + $0x40] sm:$0xff]
    %v71 = vld [vmem:[#allocation5 + $0x48] sm:$0xff]
    %v72 = vld [vmem:[#allocation5 + $0x50] sm:$0xff]
    %v73 = vld [vmem:[#allocation5 + $0x58] sm:$0xff]
    %v74 = vld [vmem:[#allocation5 + $0x60] sm:$0xff]
    %v75 = vld [vmem:[#allocation5 + $0x68] sm:$0xff]
    %v76 = vld [vmem:[#allocation5 + $0x70] sm:$0xff]
    %v77 = vld [vmem:[#allocation5 + $0x78] sm:$0xff]
    %v78 = vld [vmem:[#allocation5 + $0x80] sm:$0xff]
    %v79 = vld [vmem:[#allocation5 + $0x88] sm:$0xff]
    %v80 = vld [vmem:[#allocation5 + $0x90] sm:$0xff]
    %v81 = vld [vmem:[#allocation5 + $0x98] sm:$0xff]
    %v82 = vld [vmem:[#allocation5 + $0xa0] sm:$0xff]
    %v83 = vld [vmem:[#allocation5 + $0xa8] sm:$0xff]
    %v84 = vld [vmem:[#allocation5 + $0xb0] sm:$0xff]
    %v85 = vld [vmem:[#allocation5 + $0xb8] sm:$0xff]
    %v86 = vld [vmem:[#allocation5 + $0xc0] sm:$0xff]
    %v87 = vld [vmem:[#allocation5 + $0xc8] sm:$0xff]
    %v88 = vld [vmem:[#allocation5 + $0xd0] sm:$0xff]
    %v89 = vld [vmem:[#allocation5 + $0xd8] sm:$0xff]
    %v90 = vld [vmem:[#allocation5 + $0xe0] sm:$0xff]
    %v91 = vld [vmem:[#allocation5 + $0xe8] sm:$0xff]
    %v92 = vld [vmem:[#allocation5 + $0xf0] sm:$0xff]
    %v93 = vld [vmem:[#allocation5 + $0xf8] sm:$0xff]
    %v94 = vld [vmem:[#allocation5 + $0x100] sm:$0xff]
    %v95 = vld [vmem:[#allocation5 + $0x108] sm:$0xff]
    %v96 = vld [vmem:[#allocation5 + $0x110] sm:$0xff]
    %v97 = vld [vmem:[#allocation5 + $0x118] sm:$0xff]
    %v98 = vld [vmem:[#allocation5 + $0x120] sm:$0xff]
    %v99 = vld [vmem:[#allocation5 + $0x128] sm:$0xff]
    %v100 = vld [vmem:[#allocation5 + $0x130] sm:$0xff]
    %v101 = vld [vmem:[#allocation5 + $0x138] sm:$0xff]
    %v102 = vld [vmem:[#allocation5 + $0x140] sm:$0xff]
    %v103 = vld [vmem:[#allocation5 + $0x148] sm:$0xff]
    %v104 = vld [vmem:[#allocation5 + $0x150] sm:$0xff]
    %v105 = vld [vmem:[#allocation5 + $0x158] sm:$0xff]
    %v106 = vld [vmem:[#allocation5 + $0x160] sm:$0xff]
    %v107 = vld [vmem:[#allocation5 + $0x168] sm:$0xff]
    %v108 = vld [vmem:[#allocation5 + $0x170] sm:$0xff]
    %v109 = vld [vmem:[#allocation5 + $0x178] sm:$0xff]
    %v110 = vld [vmem:[#allocation5 + $0x180] sm:$0xff]
    %v111 = vld [vmem:[#allocation5 + $0x188] sm:$0xff]
    %v112 = vld [vmem:[#allocation5 + $0x190] sm:$0xff]
    %v113 = vld [vmem:[#allocation5 + $0x198] sm:$0xff]
    %v114 = vld [vmem:[#allocation5 + $0x1a0] sm:$0xff]
    %v115 = vld [vmem:[#allocation5 + $0x1a8] sm:$0xff]
    %v116 = vld [vmem:[#allocation5 + $0x1b0] sm:$0xff]
    %v117 = vld [vmem:[#allocation5 + $0x1b8] sm:$0xff]
    %v118 = vld [vmem:[#allocation5 + $0x1c0] sm:$0xff]
    %v119 = vld [vmem:[#allocation5 + $0x1c8] sm:$0xff]
    %v120 = vld [vmem:[#allocation5 + $0x1d0] sm:$0xff]
    %v121 = vld [vmem:[#allocation5 + $0x1d8] sm:$0xff]
    %v122 = vld [vmem:[#allocation5 + $0x1e0] sm:$0xff]
    %v123 = vld [vmem:[#allocation5 + $0x1e8] sm:$0xff]
    %v124 = vld [vmem:[#allocation5 + $0x1f0] sm:$0xff]
    %v125 = vld [vmem:[#allocation5 + $0x1f8] sm:$0xff]
    %v126 = vld [vmem:[%s2] sm:$0x3]
    %v128 = vlaneseq
    %v129 = vshrl.u32 %v128, 7
    %v130 = vsub.s32 0, %v129
    %v131 = vrot.slane %v126, %v130
    %v132 = vlaneseq
    %v133 = vshrl.u32 %v132, 7
    %v134 = vsub.s32 1, %v133
    %v135 = vrot.slane %v126, %v134
    %138 = vmatprep.subr.mxu0 %v63
    %139 = vmatpush1.msra.mxu0 %v62
    %140 = vmatprep.subr.mxu0 %v65
    %141 = vmatpush1.msra.mxu0 %v64
    %142 = vmatprep.subr.mxu0 %v67
    %143 = vmatpush1.msra.mxu0 %v66
    %144 = vmatprep.subr.mxu0 %v69
    %145 = vmatpush1.msra.mxu0 %v68
    %146 = vmatprep.subr.mxu0 %v71
    %147 = vmatpush1.msra.mxu0 %v70
    %148 = vmatprep.subr.mxu0 %v73
    %149 = vmatpush1.msra.mxu0 %v72
    %150 = vmatprep.subr.mxu0 %v75
    %151 = vmatpush1.msra.mxu0 %v74
    %152 = vmatprep.subr.mxu0 %v77
    %153 = vmatpush1.msra.mxu0 %v76
    %154 = vmatprep.subr.mxu0 %v79
    %155 = vmatpush1.msra.mxu0 %v78
    %156 = vmatprep.subr.mxu0 %v81
    %157 = vmatpush1.msra.mxu0 %v80
    %158 = vmatprep.subr.mxu0 %v83
    %159 = vmatpush1.msra.mxu0 %v82
    %160 = vmatprep.subr.mxu0 %v85
    %161 = vmatpush1.msra.mxu0 %v84
    %162 = vmatprep.subr.mxu0 %v87
    %163 = vmatpush1.msra.mxu0 %v86
    %164 = vmatprep.subr.mxu0 %v89
    %165 = vmatpush1.msra.mxu0 %v88
    %166 = vmatprep.subr.mxu0 %v91
    %167 = vmatpush1.msra.mxu0 %v90
    %168 = vmatprep.subr.mxu0 %v93
    %169 = vmatpush1.msra.mxu0 %v92
    %170 = vmatprep.subr.mxu0 %v95
    %171 = vmatpush1.msra.mxu0 %v94
    %172 = vmatprep.subr.mxu0 %v97
    %173 = vmatpush1.msra.mxu0 %v96
    %174 = vmatprep.subr.mxu0 %v99
    %175 = vmatpush1.msra.mxu0 %v98
    %176 = vmatprep.subr.mxu0 %v101
    %177 = vmatpush1.msra.mxu0 %v100
    %178 = vmatprep.subr.mxu0 %v103
    %179 = vmatpush1.msra.mxu0 %v102
    %180 = vmatprep.subr.mxu0 %v105
    %181 = vmatpush1.msra.mxu0 %v104
    %182 = vmatprep.subr.mxu0 %v107
    %183 = vmatpush1.msra.mxu0 %v106
    %184 = vmatprep.subr.mxu0 %v109
    %185 = vmatpush1.msra.mxu0 %v108
    %186 = vmatprep.subr.mxu0 %v111
    %187 = vmatpush1.msra.mxu0 %v110
    %188 = vmatprep.subr.mxu0 %v113
    %189 = vmatpush1.msra.mxu0 %v112
    %190 = vmatprep.subr.mxu0 %v115
    %191 = vmatpush1.msra.mxu0 %v114
    %192 = vmatprep.subr.mxu0 %v117
    %193 = vmatpush1.msra.mxu0 %v116
    %194 = vmatprep.subr.mxu0 %v119
    %195 = vmatpush1.msra.mxu0 %v118
    %196 = vmatprep.subr.mxu0 %v121
    %197 = vmatpush1.msra.mxu0 %v120
    %198 = vmatprep.subr.mxu0 %v123
    %199 = vmatpush1.msra.mxu0 %v122
    %200 = vmatprep.subr.mxu0 %v125
    %201 = vmatpush1.msra.mxu0 %v124
    %202 = vmatprep.mubr.f32.mxu0 %v61
    %203 = vmatmul.mubr.f32.gmra.mrb[0].mxu0 %v60
    %v204 = vpop.f32.mrb[0].mxu0
    %v205 = vadd.f32 %v131, %v204
    %v206 = vpop.f32.mrb[0].mxu0
    %v207 = vadd.f32 %v135, %v206
    %208 = vdwg.mxu0
    %vm209 = vcmp.ge.f32.partialorder %v205, 0.0
    %vm210 = vcmp.ge.f32.partialorder %v207, 0.0
    %v211 = vmul.f32 %v205, 0.01
    %v212 = vmul.f32 %v207, 0.01
    %v213 = vsel %vm209, %v205, %v211
    %v214 = vsel %vm210, %v207, %v212
    %v215 = vld [vmem:[#allocation7] sm:$0xff]
    %v216 = vld [vmem:[#allocation7 + $0x8] sm:$0xff]
    %v217 = vld [vmem:[#allocation7 + $0x10] sm:$0xff]
    %v218 = vld [vmem:[#allocation7 + $0x18] sm:$0xff]
    %v219 = vld [vmem:[#allocation7 + $0x20] sm:$0xff]
    %v220 = vld [vmem:[#allocation7 + $0x28] sm:$0xff]
    %v221 = vld [vmem:[#allocation7 + $0x30] sm:$0xff]
    %v222 = vld [vmem:[#allocation7 + $0x38] sm:$0xff]
    %v223 = vld [vmem:[#allocation7 + $0x40] sm:$0xff]
    %v224 = vld [vmem:[#allocation7 + $0x48] sm:$0xff]
    %v225 = vld [vmem:[#allocation7 + $0x50] sm:$0xff]
    %v226 = vld [vmem:[#allocation7 + $0x58] sm:$0xff]
    %v227 = vld [vmem:[#allocation7 + $0x60] sm:$0xff]
    %v228 = vld [vmem:[#allocation7 + $0x68] sm:$0xff]
    %v229 = vld [vmem:[#allocation7 + $0x70] sm:$0xff]
    %v230 = vld [vmem:[#allocation7 + $0x78] sm:$0xff]
    %v231 = vld [vmem:[#allocation7 + $0x80] sm:$0xff]
    %v232 = vld [vmem:[#allocation7 + $0x88] sm:$0xff]
    %v233 = vld [vmem:[#allocation7 + $0x90] sm:$0xff]
    %v234 = vld [vmem:[#allocation7 + $0x98] sm:$0xff]
    %v235 = vld [vmem:[#allocation7 + $0xa0] sm:$0xff]
    %v236 = vld [vmem:[#allocation7 + $0xa8] sm:$0xff]
    %v237 = vld [vmem:[#allocation7 + $0xb0] sm:$0xff]
    %v238 = vld [vmem:[#allocation7 + $0xb8] sm:$0xff]
    %v239 = vld [vmem:[#allocation7 + $0xc0] sm:$0xff]
    %v240 = vld [vmem:[#allocation7 + $0xc8] sm:$0xff]
    %v241 = vld [vmem:[#allocation7 + $0xd0] sm:$0xff]
    %v242 = vld [vmem:[#allocation7 + $0xd8] sm:$0xff]
    %v243 = vld [vmem:[#allocation7 + $0xe0] sm:$0xff]
    %v244 = vld [vmem:[#allocation7 + $0xe8] sm:$0xff]
    %v245 = vld [vmem:[#allocation7 + $0xf0] sm:$0xff]
    %v246 = vld [vmem:[#allocation7 + $0xf8] sm:$0xff]
    %v247 = vld [vmem:[#allocation7 + $0x100] sm:$0xff]
    %v248 = vld [vmem:[#allocation7 + $0x108] sm:$0xff]
    %v249 = vld [vmem:[#allocation7 + $0x110] sm:$0xff]
    %v250 = vld [vmem:[#allocation7 + $0x118] sm:$0xff]
    %v251 = vld [vmem:[#allocation7 + $0x120] sm:$0xff]
    %v252 = vld [vmem:[#allocation7 + $0x128] sm:$0xff]
    %v253 = vld [vmem:[#allocation7 + $0x130] sm:$0xff]
    %v254 = vld [vmem:[#allocation7 + $0x138] sm:$0xff]
    %v255 = vld [vmem:[#allocation7 + $0x140] sm:$0xff]
    %v256 = vld [vmem:[#allocation7 + $0x148] sm:$0xff]
    %v257 = vld [vmem:[#allocation7 + $0x150] sm:$0xff]
    %v258 = vld [vmem:[#allocation7 + $0x158] sm:$0xff]
    %v259 = vld [vmem:[#allocation7 + $0x160] sm:$0xff]
    %v260 = vld [vmem:[#allocation7 + $0x168] sm:$0xff]
    %v261 = vld [vmem:[#allocation7 + $0x170] sm:$0xff]
    %v262 = vld [vmem:[#allocation7 + $0x178] sm:$0xff]
    %v263 = vld [vmem:[#allocation7 + $0x180] sm:$0xff]
    %v264 = vld [vmem:[#allocation7 + $0x188] sm:$0xff]
    %v265 = vld [vmem:[#allocation7 + $0x190] sm:$0xff]
    %v266 = vld [vmem:[#allocation7 + $0x198] sm:$0xff]
    %v267 = vld [vmem:[#allocation7 + $0x1a0] sm:$0xff]
    %v268 = vld [vmem:[#allocation7 + $0x1a8] sm:$0xff]
    %v269 = vld [vmem:[#allocation7 + $0x1b0] sm:$0xff]
    %v270 = vld [vmem:[#allocation7 + $0x1b8] sm:$0xff]
    %v271 = vld [vmem:[#allocation7 + $0x1c0] sm:$0xff]
    %v272 = vld [vmem:[#allocation7 + $0x1c8] sm:$0xff]
    %v273 = vld [vmem:[#allocation7 + $0x1d0] sm:$0xff]
    %v274 = vld [vmem:[#allocation7 + $0x1d8] sm:$0xff]
    %v275 = vld [vmem:[#allocation7 + $0x1e0] sm:$0xff]
    %v276 = vld [vmem:[#allocation7 + $0x1e8] sm:$0xff]
    %v277 = vld [vmem:[#allocation7 + $0x1f0] sm:$0xff]
    %v278 = vld [vmem:[#allocation7 + $0x1f8] sm:$0xff]
    %v279 = vld [vmem:[%s4] sm:$0x3]
    %v281 = vlaneseq
    %v282 = vshrl.u32 %v281, 7
    %v283 = vsub.s32 0, %v282
    %v284 = vrot.slane %v279, %v283
    %v285 = vlaneseq
    %v286 = vshrl.u32 %v285, 7
    %v287 = vsub.s32 1, %v286
    %v288 = vrot.slane %v279, %v287
    %291 = vmatprep.subr.mxu0 %v216
    %292 = vmatpush1.msra.mxu0 %v215
    %293 = vmatprep.subr.mxu0 %v218
    %294 = vmatpush1.msra.mxu0 %v217
    %295 = vmatprep.subr.mxu0 %v220
    %296 = vmatpush1.msra.mxu0 %v219
    %297 = vmatprep.subr.mxu0 %v222
    %298 = vmatpush1.msra.mxu0 %v221
    %299 = vmatprep.subr.mxu0 %v224
    %300 = vmatpush1.msra.mxu0 %v223
    %301 = vmatprep.subr.mxu0 %v226
    %302 = vmatpush1.msra.mxu0 %v225
    %303 = vmatprep.subr.mxu0 %v228
    %304 = vmatpush1.msra.mxu0 %v227
    %305 = vmatprep.subr.mxu0 %v230
    %306 = vmatpush1.msra.mxu0 %v229
    %307 = vmatprep.subr.mxu0 %v232
    %308 = vmatpush1.msra.mxu0 %v231
    %309 = vmatprep.subr.mxu0 %v234
    %310 = vmatpush1.msra.mxu0 %v233
    %311 = vmatprep.subr.mxu0 %v236
    %312 = vmatpush1.msra.mxu0 %v235
    %313 = vmatprep.subr.mxu0 %v238
    %314 = vmatpush1.msra.mxu0 %v237
    %315 = vmatprep.subr.mxu0 %v240
    %316 = vmatpush1.msra.mxu0 %v239
    %317 = vmatprep.subr.mxu0 %v242
    %318 = vmatpush1.msra.mxu0 %v241
    %319 = vmatprep.subr.mxu0 %v244
    %320 = vmatpush1.msra.mxu0 %v243
    %321 = vmatprep.subr.mxu0 %v246
    %322 = vmatpush1.msra.mxu0 %v245
    %323 = vmatprep.subr.mxu0 %v248
    %324 = vmatpush1.msra.mxu0 %v247
    %325 = vmatprep.subr.mxu0 %v250
    %326 = vmatpush1.msra.mxu0 %v249
    %327 = vmatprep.subr.mxu0 %v252
    %328 = vmatpush1.msra.mxu0 %v251
    %329 = vmatprep.subr.mxu0 %v254
    %330 = vmatpush1.msra.mxu0 %v253
    %331 = vmatprep.subr.mxu0 %v256
    %332 = vmatpush1.msra.mxu0 %v255
    %333 = vmatprep.subr.mxu0 %v258
    %334 = vmatpush1.msra.mxu0 %v257
    %335 = vmatprep.subr.mxu0 %v260
    %336 = vmatpush1.msra.mxu0 %v259
    %337 = vmatprep.subr.mxu0 %v262
    %338 = vmatpush1.msra.mxu0 %v261
    %339 = vmatprep.subr.mxu0 %v264
    %340 = vmatpush1.msra.mxu0 %v263
    %341 = vmatprep.subr.mxu0 %v266
    %342 = vmatpush1.msra.mxu0 %v265
    %343 = vmatprep.subr.mxu0 %v268
    %344 = vmatpush1.msra.mxu0 %v267
    %345 = vmatprep.subr.mxu0 %v270
    %346 = vmatpush1.msra.mxu0 %v269
    %347 = vmatprep.subr.mxu0 %v272
    %348 = vmatpush1.msra.mxu0 %v271
    %349 = vmatprep.subr.mxu0 %v274
    %350 = vmatpush1.msra.mxu0 %v273
    %351 = vmatprep.subr.mxu0 %v276
    %352 = vmatpush1.msra.mxu0 %v275
    %353 = vmatprep.subr.mxu0 %v278
    %354 = vmatpush1.msra.mxu0 %v277
    %355 = vmatprep.mubr.f32.mxu0 %v214
    %356 = vmatmul.mubr.f32.gmra.mrb[0].mxu0 %v213
    %v357 = vpop.f32.mrb[0].mxu0
    %v358 = vadd.f32 %v284, %v357
    %v359 = vpop.f32.mrb[0].mxu0
    %v360 = vadd.f32 %v288, %v359
    %361 = vdwg.mxu0
    %362 = vst [vmem:[#allocation8] sm:$0xff] %v358
    %363 = vst [vmem:[#allocation8 + $0x8] sm:$0xff] %v360
    // Predicated region
    $region34: #{tpu_custom_call.1} parent=1 // pred_check
      _
    $region35: #{tpu_custom_call.1} parent=1 // pred_check_branch
      %365 = sbr.rel (0) target = $region37
    $region36: #{tpu_custom_call.1} parent=1 // pred_region
      %s367 = ssub.s32 256, 256
      %368 = vsyncadd [#allocation4], %s367
      %s370 = sshll.u32 [#allocation8], 4
      %s371 = int_to_ptr.vmem [resolvable:$true] %s370
      %373 = dma.vmem_to_hbm [thread:$0]  %s371, 256, %s5, [#allocation4]
    $region37: #{tpu_custom_call.1} parent=1 // pred_fallthru
      _
    // Predicated region
    $region38: #{tpu_custom_call.1} parent=1 // pred_check
      _
    $region39: #{tpu_custom_call.1} parent=1 // pred_check_branch
      %375 = sbr.rel (0) target = $region41
    $region40: #{tpu_custom_call.1} parent=1 // pred_region
      %376 = dma.done [#allocation4], 256
    $region41: #{tpu_custom_call.1} parent=1 // pred_fallthru
      _
    %377 = vsyncpa [#allocation3], 1
    %378 = vsyncpa [#allocation6], 1
    %379 = vsyncpa [#allocation4], 1

// kernel: tpu_custom_call.1
$region0: #{tpu_custom_call.1}
  #allocation0 [shape = 'u32[]', space=smem, size = 0x4, offset = 0x4, fixed_abs, tag = 'smem constant byte address 0x4 - core index']
  #allocation1 [shape = 'u32[144,128]{1,0:T(1,128)}', space=vmem, size = 0x12000, scoped, tag = 'internal scratch']
  %s0 = inlined_call_operand.hbm [shape: f32[8,256], index: 0, kind: input, shape index: {}]
  %s1 = inlined_call_operand.hbm [shape: f32[256,256], index: 1, kind: input, shape index: {}]
  %s2 = inlined_call_operand.vmem [shape: f32[1,256], index: 2, kind: input, shape index: {}]
  %s3 = inlined_call_operand.hbm [shape: f32[256,256], index: 3, kind: input, shape index: {}]
  %s4 = inlined_call_operand.vmem [shape: f32[1,256], index: 4, kind: input, shape index: {}]
  %s5 = inlined_call_operand.hbm [shape: f32[8,256], index: 5, kind: output, shape index: {}]
  %s6 = sld [smem:[#allocation0]]
  $region42: #{tpu_custom_call.1} parent=0
    _
  %s8 = ssub.s32 1, %s6
  %s9 = scalar_select 0, %s8, %s6
  $region1: #{tpu_custom_call.1} parent=0
    #allocation2 [shape = 'u8[8192]{0}', space=vmem, size = 0x2000, scoped, tag = 'input window, operand 0, single buffered']
    #allocation3 [shape = 's32[1]{0}', space=sflag, size = 0x4, scoped, tag = 'scoped memory for tpu_custom_call.1']
    #allocation4 [shape = 's32[1]{0}', space=sflag, size = 0x4, scoped, tag = 'scoped memory for tpu_custom_call.1']
    #allocation5 [shape = 'u8[262144]{0}', space=vmem, size = 0x40000, scoped, tag = 'input window, operand 1, single buffered']
    #allocation6 [shape = 's32[1]{0}', space=sflag, size = 0x4, scoped, tag = 'scoped memory for tpu_custom_call.1']
    #allocation7 [shape = 'u8[262144]{0}', space=vmem, size = 0x40000, scoped, tag = 'input window, operand 3, single buffered']
    #allocation8 [shape = 'u8[8192]{0}', space=vmem, size = 0x2000, scoped, tag = 'output window, operand 0, single buffered']
    %10 = vsyncpa [#allocation3], 0
    %11 = vsyncpa [#allocation6], 0
    %12 = vsyncpa [#allocation4], 0
    // Predicated region
    $region2: #{tpu_custom_call.1} parent=1 // pred_check
      _
    $region3: #{tpu_custom_call.1} parent=1 // pred_check_branch
      %14 = sbr.rel (0) target = $region5
    $region4: #{tpu_custom_call.1} parent=1 // pred_region
      %s16 = ssub.s32 256, 256
      %17 = vsyncadd [#allocation3], %s16
      %s19 = sshll.u32 [#allocation2], 4
      %s20 = int_to_ptr.vmem [resolvable:$true] %s19
      %22 = dma.hbm_to_vmem [thread:$0]  %s0, 256, %s20, [#allocation3]
    $region5: #{tpu_custom_call.1} parent=1 // pred_fallthru
      _
    // Predicated region
    $region6: #{tpu_custom_call.1} parent=1 // pred_check
      _
    $region7: #{tpu_custom_call.1} parent=1 // pred_check_branch
      %24 = sbr.rel (0) target = $region9
    $region8: #{tpu_custom_call.1} parent=1 // pred_region
      %s26 = ssub.s32 8192, 8192
      %27 = vsyncadd [#allocation6], %s26
      %s28 = sshll.u32 [#allocation5], 4
      %s29 = int_to_ptr.vmem [resolvable:$true] %s28
      %34 = dma.hbm_to_vmem [thread:$0]  %s1, 8192, %s29, [#allocation6], 256, 256, 16
    $region9: #{tpu_custom_call.1} parent=1 // pred_fallthru
      _
    // Predicated region
    $region10: #{tpu_custom_call.1} parent=1 // pred_check
      _
    $region11: #{tpu_custom_call.1} parent=1 // pred_check_branch
      %36 = sbr.rel (0) target = $region13
    $region12: #{tpu_custom_call.1} parent=1 // pred_region
      _
    $region13: #{tpu_custom_call.1} parent=1 // pred_fallthru
      _
    // Predicated region
    $region14: #{tpu_custom_call.1} parent=1 // pred_check
      _
    $region15: #{tpu_custom_call.1} parent=1 // pred_check_branch
      %38 = sbr.rel (0) target = $region17
    $region16: #{tpu_custom_call.1} parent=1 // pred_region
      %s40 = ssub.s32 8192, 8192
      %41 = vsyncadd [#allocation6], %s40
      %s42 = sshll.u32 [#allocation7], 4
      %s43 = int_to_ptr.vmem [resolvable:$true] %s42
      %48 = dma.hbm_to_vmem [thread:$0]  %s3, 8192, %s43, [#allocation6], 256, 256, 16
    $region17: #{tpu_custom_call.1} parent=1 // pred_fallthru
      _
    // Predicated region
    $region18: #{tpu_custom_call.1} parent=1 // pred_check
      _
    $region19: #{tpu_custom_call.1} parent=1 // pred_check_branch
      %50 = sbr.rel (0) target = $region21
    $region20: #{tpu_custom_call.1} parent=1 // pred_region
      _
    $region21: #{tpu_custom_call.1} parent=1 // pred_fallthru
      _
    // Predicated region
    $region22: #{tpu_custom_call.1} parent=1 // pred_check
      _
    $region23: #{tpu_custom_call.1} parent=1 // pred_check_branch
      %52 = sbr.rel (0) target = $region25
    $region24: #{tpu_custom_call.1} parent=1 // pred_region
      %53 = dma.done [#allocation3], 256
    $region25: #{tpu_custom_call.1} parent=1 // pred_fallthru
      _
    // Predicated region
    $region26: #{tpu_custom_call.1} parent=1 // pred_check
      _
    $region27: #{tpu_custom_call.1} parent=1 // pred_check_branch
      %55 = sbr.rel (0) target = $region29
    $region28: #{tpu_custom_call.1} parent=1 // pred_region
      %56 = dma.done [#allocation6], 8192
    $region29: #{tpu_custom_call.1} parent=1 // pred_fallthru
      _
    // Predicated region
    $region30: #{tpu_custom_call.1} parent=1 // pred_check
      _
    $region31: #{tpu_custom_call.1} parent=1 // pred_check_branch
      %58 = sbr.rel (0) target = $region33
    $region32: #{tpu_custom_call.1} parent=1 // pred_region
      %59 = dma.done [#allocation6], 8192
    $region33: #{tpu_custom_call.1} parent=1 // pred_fallthru
      _
    %v60 = vld [vmem:[#allocation2] sm:$0xff]
    %v61 = vld [vmem:[#allocation2 + $0x8] sm:$0xff]
    %v62 = vld [vmem:[#allocation5] sm:$0xff]
    %v63 = vld [vmem:[#allocation5 + $0x8] sm:$0xff]
    %v64 = vld [vmem:[#allocation5 + $0x10] sm:$0xff]
    %v65 = vld [vmem:[#allocation5 + $0x18] sm:$0xff]
    %v66 = vld [vmem:[#allocation5 + $0x20] sm:$0xff]
    %v67 = vld [vmem:[#allocation5 + $0x28] sm:$0xff]
    %v68 = vld [vmem:[#allocation5 + $0x30] sm:$0xff]
    %v69 = vld [vmem:[#allocation5 + $0x38] sm:$0xff]
    %v70 = vld [vmem:[#allocation5 + $0x40] sm:$0xff]
    %v71 = vld [vmem:[#allocation5 + $0x48] sm:$0xff]
    %v72 = vld [vmem:[#allocation5 + $0x50] sm:$0xff]
    %v73 = vld [vmem:[#allocation5 + $0x58] sm:$0xff]
    %v74 = vld [vmem:[#allocation5 + $0x60] sm:$0xff]
    %v75 = vld [vmem:[#allocation5 + $0x68] sm:$0xff]
    %v76 = vld [vmem:[#allocation5 + $0x70] sm:$0xff]
    %v77 = vld [vmem:[#allocation5 + $0x78] sm:$0xff]
    %v78 = vld [vmem:[#allocation5 + $0x80] sm:$0xff]
    %v79 = vld [vmem:[#allocation5 + $0x88] sm:$0xff]
    %v80 = vld [vmem:[#allocation5 + $0x90] sm:$0xff]
    %v81 = vld [vmem:[#allocation5 + $0x98] sm:$0xff]
    %v82 = vld [vmem:[#allocation5 + $0xa0] sm:$0xff]
    %v83 = vld [vmem:[#allocation5 + $0xa8] sm:$0xff]
    %v84 = vld [vmem:[#allocation5 + $0xb0] sm:$0xff]
    %v85 = vld [vmem:[#allocation5 + $0xb8] sm:$0xff]
    %v86 = vld [vmem:[#allocation5 + $0xc0] sm:$0xff]
    %v87 = vld [vmem:[#allocation5 + $0xc8] sm:$0xff]
    %v88 = vld [vmem:[#allocation5 + $0xd0] sm:$0xff]
    %v89 = vld [vmem:[#allocation5 + $0xd8] sm:$0xff]
    %v90 = vld [vmem:[#allocation5 + $0xe0] sm:$0xff]
    %v91 = vld [vmem:[#allocation5 + $0xe8] sm:$0xff]
    %v92 = vld [vmem:[#allocation5 + $0xf0] sm:$0xff]
    %v93 = vld [vmem:[#allocation5 + $0xf8] sm:$0xff]
    %v94 = vld [vmem:[#allocation5 + $0x100] sm:$0xff]
    %v95 = vld [vmem:[#allocation5 + $0x108] sm:$0xff]
    %v96 = vld [vmem:[#allocation5 + $0x110] sm:$0xff]
    %v97 = vld [vmem:[#allocation5 + $0x118] sm:$0xff]
    %v98 = vld [vmem:[#allocation5 + $0x120] sm:$0xff]
    %v99 = vld [vmem:[#allocation5 + $0x128] sm:$0xff]
    %v100 = vld [vmem:[#allocation5 + $0x130] sm:$0xff]
    %v101 = vld [vmem:[#allocation5 + $0x138] sm:$0xff]
    %v102 = vld [vmem:[#allocation5 + $0x140] sm:$0xff]
    %v103 = vld [vmem:[#allocation5 + $0x148] sm:$0xff]
    %v104 = vld [vmem:[#allocation5 + $0x150] sm:$0xff]
    %v105 = vld [vmem:[#allocation5 + $0x158] sm:$0xff]
    %v106 = vld [vmem:[#allocation5 + $0x160] sm:$0xff]
    %v107 = vld [vmem:[#allocation5 + $0x168] sm:$0xff]
    %v108 = vld [vmem:[#allocation5 + $0x170] sm:$0xff]
    %v109 = vld [vmem:[#allocation5 + $0x178] sm:$0xff]
    %v110 = vld [vmem:[#allocation5 + $0x180] sm:$0xff]
    %v111 = vld [vmem:[#allocation5 + $0x188] sm:$0xff]
    %v112 = vld [vmem:[#allocation5 + $0x190] sm:$0xff]
    %v113 = vld [vmem:[#allocation5 + $0x198] sm:$0xff]
    %v114 = vld [vmem:[#allocation5 + $0x1a0] sm:$0xff]
    %v115 = vld [vmem:[#allocation5 + $0x1a8] sm:$0xff]
    %v116 = vld [vmem:[#allocation5 + $0x1b0] sm:$0xff]
    %v117 = vld [vmem:[#allocation5 + $0x1b8] sm:$0xff]
    %v118 = vld [vmem:[#allocation5 + $0x1c0] sm:$0xff]
    %v119 = vld [vmem:[#allocation5 + $0x1c8] sm:$0xff]
    %v120 = vld [vmem:[#allocation5 + $0x1d0] sm:$0xff]
    %v121 = vld [vmem:[#allocation5 + $0x1d8] sm:$0xff]
    %v122 = vld [vmem:[#allocation5 + $0x1e0] sm:$0xff]
    %v123 = vld [vmem:[#allocation5 + $0x1e8] sm:$0xff]
    %v124 = vld [vmem:[#allocation5 + $0x1f0] sm:$0xff]
    %v125 = vld [vmem:[#allocation5 + $0x1f8] sm:$0xff]
    %v126 = vld [vmem:[%s2] sm:$0x3]
    %v128 = vlaneseq
    %v129 = vshrl.u32 %v128, 7
    %v130 = vsub.s32 0, %v129
    %v131 = vrot.slane %v126, %v130
    %v132 = vlaneseq
    %v133 = vshrl.u32 %v132, 7
    %v134 = vsub.s32 1, %v133
    %v135 = vrot.slane %v126, %v134
    %138 = vmatprep.subr.mxu0 %v63
    %139 = vmatpush1.msra.mxu0 %v62
    %140 = vmatprep.subr.mxu0 %v65
    %141 = vmatpush1.msra.mxu0 %v64
    %142 = vmatprep.subr.mxu0 %v67
    %143 = vmatpush1.msra.mxu0 %v66
    %144 = vmatprep.subr.mxu0 %v69
    %145 = vmatpush1.msra.mxu0 %v68
    %146 = vmatprep.subr.mxu0 %v71
    %147 = vmatpush1.msra.mxu0 %v70
    %148 = vmatprep.subr.mxu0 %v73
    %149 = vmatpush1.msra.mxu0 %v72
    %150 = vmatprep.subr.mxu0 %v75
    %151 = vmatpush1.msra.mxu0 %v74
    %152 = vmatprep.subr.mxu0 %v77
    %153 = vmatpush1.msra.mxu0 %v76
    %154 = vmatprep.subr.mxu0 %v79
    %155 = vmatpush1.msra.mxu0 %v78
    %156 = vmatprep.subr.mxu0 %v81
    %157 = vmatpush1.msra.mxu0 %v80
    %158 = vmatprep.subr.mxu0 %v83
    %159 = vmatpush1.msra.mxu0 %v82
    %160 = vmatprep.subr.mxu0 %v85
    %161 = vmatpush1.msra.mxu0 %v84
    %162 = vmatprep.subr.mxu0 %v87
    %163 = vmatpush1.msra.mxu0 %v86
    %164 = vmatprep.subr.mxu0 %v89
    %165 = vmatpush1.msra.mxu0 %v88
    %166 = vmatprep.subr.mxu0 %v91
    %167 = vmatpush1.msra.mxu0 %v90
    %168 = vmatprep.subr.mxu0 %v93
    %169 = vmatpush1.msra.mxu0 %v92
    %170 = vmatprep.subr.mxu0 %v95
    %171 = vmatpush1.msra.mxu0 %v94
    %172 = vmatprep.subr.mxu0 %v97
    %173 = vmatpush1.msra.mxu0 %v96
    %174 = vmatprep.subr.mxu0 %v99
    %175 = vmatpush1.msra.mxu0 %v98
    %176 = vmatprep.subr.mxu0 %v101
    %177 = vmatpush1.msra.mxu0 %v100
    %178 = vmatprep.subr.mxu0 %v103
    %179 = vmatpush1.msra.mxu0 %v102
    %180 = vmatprep.subr.mxu0 %v105
    %181 = vmatpush1.msra.mxu0 %v104
    %182 = vmatprep.subr.mxu0 %v107
    %183 = vmatpush1.msra.mxu0 %v106
    %184 = vmatprep.subr.mxu0 %v109
    %185 = vmatpush1.msra.mxu0 %v108
    %186 = vmatprep.subr.mxu0 %v111
    %187 = vmatpush1.msra.mxu0 %v110
    %188 = vmatprep.subr.mxu0 %v113
    %189 = vmatpush1.msra.mxu0 %v112
    %190 = vmatprep.subr.mxu0 %v115
    %191 = vmatpush1.msra.mxu0 %v114
    %192 = vmatprep.subr.mxu0 %v117
    %193 = vmatpush1.msra.mxu0 %v116
    %194 = vmatprep.subr.mxu0 %v119
    %195 = vmatpush1.msra.mxu0 %v118
    %196 = vmatprep.subr.mxu0 %v121
    %197 = vmatpush1.msra.mxu0 %v120
    %198 = vmatprep.subr.mxu0 %v123
    %199 = vmatpush1.msra.mxu0 %v122
    %200 = vmatprep.subr.mxu0 %v125
    %201 = vmatpush1.msra.mxu0 %v124
    %202 = vmatprep.mubr.f32.mxu0 %v61
    %203 = vmatmul.mubr.f32.gmra.mrb[0].mxu0 %v60
    %v204 = vpop.f32.mrb[0].mxu0
    %v205 = vadd.f32 %v131, %v204
    %v206 = vpop.f32.mrb[0].mxu0
    %v207 = vadd.f32 %v135, %v206
    %208 = vdwg.mxu0
    %vm209 = vcmp.ge.f32.partialorder %v205, 0.0
    %vm210 = vcmp.ge.f32.partialorder %v207, 0.0
    %v211 = vmul.f32 %v205, 0.01
    %v212 = vmul.f32 %v207, 0.01
    %v213 = vsel %vm209, %v205, %v211
    %v214 = vsel %vm210, %v207, %v212
    %v215 = vld [vmem:[#allocation7] sm:$0xff]
    %v216 = vld [vmem:[#allocation7 + $0x8] sm:$0xff]
    %v217 = vld [vmem:[#allocation7 + $0x10] sm:$0xff]
    %v218 = vld [vmem:[#allocation7 + $0x18] sm:$0xff]
    %v219 = vld [vmem:[#allocation7 + $0x20] sm:$0xff]
    %v220 = vld [vmem:[#allocation7 + $0x28] sm:$0xff]
    %v221 = vld [vmem:[#allocation7 + $0x30] sm:$0xff]
    %v222 = vld [vmem:[#allocation7 + $0x38] sm:$0xff]
    %v223 = vld [vmem:[#allocation7 + $0x40] sm:$0xff]
    %v224 = vld [vmem:[#allocation7 + $0x48] sm:$0xff]
    %v225 = vld [vmem:[#allocation7 + $0x50] sm:$0xff]
    %v226 = vld [vmem:[#allocation7 + $0x58] sm:$0xff]
    %v227 = vld [vmem:[#allocation7 + $0x60] sm:$0xff]
    %v228 = vld [vmem:[#allocation7 + $0x68] sm:$0xff]
    %v229 = vld [vmem:[#allocation7 + $0x70] sm:$0xff]
    %v230 = vld [vmem:[#allocation7 + $0x78] sm:$0xff]
    %v231 = vld [vmem:[#allocation7 + $0x80] sm:$0xff]
    %v232 = vld [vmem:[#allocation7 + $0x88] sm:$0xff]
    %v233 = vld [vmem:[#allocation7 + $0x90] sm:$0xff]
    %v234 = vld [vmem:[#allocation7 + $0x98] sm:$0xff]
    %v235 = vld [vmem:[#allocation7 + $0xa0] sm:$0xff]
    %v236 = vld [vmem:[#allocation7 + $0xa8] sm:$0xff]
    %v237 = vld [vmem:[#allocation7 + $0xb0] sm:$0xff]
    %v238 = vld [vmem:[#allocation7 + $0xb8] sm:$0xff]
    %v239 = vld [vmem:[#allocation7 + $0xc0] sm:$0xff]
    %v240 = vld [vmem:[#allocation7 + $0xc8] sm:$0xff]
    %v241 = vld [vmem:[#allocation7 + $0xd0] sm:$0xff]
    %v242 = vld [vmem:[#allocation7 + $0xd8] sm:$0xff]
    %v243 = vld [vmem:[#allocation7 + $0xe0] sm:$0xff]
    %v244 = vld [vmem:[#allocation7 + $0xe8] sm:$0xff]
    %v245 = vld [vmem:[#allocation7 + $0xf0] sm:$0xff]
    %v246 = vld [vmem:[#allocation7 + $0xf8] sm:$0xff]
    %v247 = vld [vmem:[#allocation7 + $0x100] sm:$0xff]
    %v248 = vld [vmem:[#allocation7 + $0x108] sm:$0xff]
    %v249 = vld [vmem:[#allocation7 + $0x110] sm:$0xff]
    %v250 = vld [vmem:[#allocation7 + $0x118] sm:$0xff]
    %v251 = vld [vmem:[#allocation7 + $0x120] sm:$0xff]
    %v252 = vld [vmem:[#allocation7 + $0x128] sm:$0xff]
    %v253 = vld [vmem:[#allocation7 + $0x130] sm:$0xff]
    %v254 = vld [vmem:[#allocation7 + $0x138] sm:$0xff]
    %v255 = vld [vmem:[#allocation7 + $0x140] sm:$0xff]
    %v256 = vld [vmem:[#allocation7 + $0x148] sm:$0xff]
    %v257 = vld [vmem:[#allocation7 + $0x150] sm:$0xff]
    %v258 = vld [vmem:[#allocation7 + $0x158] sm:$0xff]
    %v259 = vld [vmem:[#allocation7 + $0x160] sm:$0xff]
    %v260 = vld [vmem:[#allocation7 + $0x168] sm:$0xff]
    %v261 = vld [vmem:[#allocation7 + $0x170] sm:$0xff]
    %v262 = vld [vmem:[#allocation7 + $0x178] sm:$0xff]
    %v263 = vld [vmem:[#allocation7 + $0x180] sm:$0xff]
    %v264 = vld [vmem:[#allocation7 + $0x188] sm:$0xff]
    %v265 = vld [vmem:[#allocation7 + $0x190] sm:$0xff]
    %v266 = vld [vmem:[#allocation7 + $0x198] sm:$0xff]
    %v267 = vld [vmem:[#allocation7 + $0x1a0] sm:$0xff]
    %v268 = vld [vmem:[#allocation7 + $0x1a8] sm:$0xff]
    %v269 = vld [vmem:[#allocation7 + $0x1b0] sm:$0xff]
    %v270 = vld [vmem:[#allocation7 + $0x1b8] sm:$0xff]
    %v271 = vld [vmem:[#allocation7 + $0x1c0] sm:$0xff]
    %v272 = vld [vmem:[#allocation7 + $0x1c8] sm:$0xff]
    %v273 = vld [vmem:[#allocation7 + $0x1d0] sm:$0xff]
    %v274 = vld [vmem:[#allocation7 + $0x1d8] sm:$0xff]
    %v275 = vld [vmem:[#allocation7 + $0x1e0] sm:$0xff]
    %v276 = vld [vmem:[#allocation7 + $0x1e8] sm:$0xff]
    %v277 = vld [vmem:[#allocation7 + $0x1f0] sm:$0xff]
    %v278 = vld [vmem:[#allocation7 + $0x1f8] sm:$0xff]
    %v279 = vld [vmem:[%s4] sm:$0x3]
    %v281 = vlaneseq
    %v282 = vshrl.u32 %v281, 7
    %v283 = vsub.s32 0, %v282
    %v284 = vrot.slane %v279, %v283
    %v285 = vlaneseq
    %v286 = vshrl.u32 %v285, 7
    %v287 = vsub.s32 1, %v286
    %v288 = vrot.slane %v279, %v287
    %291 = vmatprep.subr.mxu0 %v216
    %292 = vmatpush1.msra.mxu0 %v215
    %293 = vmatprep.subr.mxu0 %v218
    %294 = vmatpush1.msra.mxu0 %v217
    %295 = vmatprep.subr.mxu0 %v220
    %296 = vmatpush1.msra.mxu0 %v219
    %297 = vmatprep.subr.mxu0 %v222
    %298 = vmatpush1.msra.mxu0 %v221
    %299 = vmatprep.subr.mxu0 %v224
    %300 = vmatpush1.msra.mxu0 %v223
    %301 = vmatprep.subr.mxu0 %v226
    %302 = vmatpush1.msra.mxu0 %v225
    %303 = vmatprep.subr.mxu0 %v228
    %304 = vmatpush1.msra.mxu0 %v227
    %305 = vmatprep.subr.mxu0 %v230
    %306 = vmatpush1.msra.mxu0 %v229
    %307 = vmatprep.subr.mxu0 %v232
    %308 = vmatpush1.msra.mxu0 %v231
    %309 = vmatprep.subr.mxu0 %v234
    %310 = vmatpush1.msra.mxu0 %v233
    %311 = vmatprep.subr.mxu0 %v236
    %312 = vmatpush1.msra.mxu0 %v235
    %313 = vmatprep.subr.mxu0 %v238
    %314 = vmatpush1.msra.mxu0 %v237
    %315 = vmatprep.subr.mxu0 %v240
    %316 = vmatpush1.msra.mxu0 %v239
    %317 = vmatprep.subr.mxu0 %v242
    %318 = vmatpush1.msra.mxu0 %v241
    %319 = vmatprep.subr.mxu0 %v244
    %320 = vmatpush1.msra.mxu0 %v243
    %321 = vmatprep.subr.mxu0 %v246
    %322 = vmatpush1.msra.mxu0 %v245
    %323 = vmatprep.subr.mxu0 %v248
    %324 = vmatpush1.msra.mxu0 %v247
    %325 = vmatprep.subr.mxu0 %v250
    %326 = vmatpush1.msra.mxu0 %v249
    %327 = vmatprep.subr.mxu0 %v252
    %328 = vmatpush1.msra.mxu0 %v251
    %329 = vmatprep.subr.mxu0 %v254
    %330 = vmatpush1.msra.mxu0 %v253
    %331 = vmatprep.subr.mxu0 %v256
    %332 = vmatpush1.msra.mxu0 %v255
    %333 = vmatprep.subr.mxu0 %v258
    %334 = vmatpush1.msra.mxu0 %v257
    %335 = vmatprep.subr.mxu0 %v260
    %336 = vmatpush1.msra.mxu0 %v259
    %337 = vmatprep.subr.mxu0 %v262
    %338 = vmatpush1.msra.mxu0 %v261
    %339 = vmatprep.subr.mxu0 %v264
    %340 = vmatpush1.msra.mxu0 %v263
    %341 = vmatprep.subr.mxu0 %v266
    %342 = vmatpush1.msra.mxu0 %v265
    %343 = vmatprep.subr.mxu0 %v268
    %344 = vmatpush1.msra.mxu0 %v267
    %345 = vmatprep.subr.mxu0 %v270
    %346 = vmatpush1.msra.mxu0 %v269
    %347 = vmatprep.subr.mxu0 %v272
    %348 = vmatpush1.msra.mxu0 %v271
    %349 = vmatprep.subr.mxu0 %v274
    %350 = vmatpush1.msra.mxu0 %v273
    %351 = vmatprep.subr.mxu0 %v276
    %352 = vmatpush1.msra.mxu0 %v275
    %353 = vmatprep.subr.mxu0 %v278
    %354 = vmatpush1.msra.mxu0 %v277
    %355 = vmatprep.mubr.f32.mxu0 %v214
    %356 = vmatmul.mubr.f32.gmra.mrb[0].mxu0 %v213
    %v357 = vpop.f32.mrb[0].mxu0
    %v358 = vadd.f32 %v284, %v357
    %v359 = vpop.f32.mrb[0].mxu0
    %v360 = vadd.f32 %v288, %v359
    %361 = vdwg.mxu0
    %362 = vst [vmem:[#allocation8] sm:$0xff] %v358
    %363 = vst [vmem:[#allocation8 + $0x8] sm:$0xff] %v360
    // Predicated region
    $region34: #{tpu_custom_call.1} parent=1 // pred_check
      _
    $region35: #{tpu_custom_call.1} parent=1 // pred_check_branch
      %365 = sbr.rel (0) target = $region37
    $region36: #{tpu_custom_call.1} parent=1 // pred_region
      %s367 = ssub.s32 256, 256
      %368 = vsyncadd [#allocation4], %s367
      %s370 = sshll.u32 [#allocation8], 4
      %s371 = int_to_ptr.vmem [resolvable:$true] %s370
      %373 = dma.vmem_to_hbm [thread:$0]  %s371, 256, %s5, [#allocation4]
    $region37: #{tpu_custom_call.1} parent=1 // pred_fallthru
      _
    // Predicated region
    $region38: #{tpu_custom_call.1} parent=1 // pred_check
      _
    $region39: #{tpu_custom_call.1} parent=1 // pred_check_branch
      %375 = sbr.rel (0) target = $region41
    $region40: #{tpu_custom_call.1} parent=1 // pred_region
      %376 = dma.done [#allocation4], 256
    $region41: #{tpu_custom_call.1} parent=1 // pred_fallthru
      _
    %377 = vsyncpa [#allocation3], 1
    %378 = vsyncpa [#allocation6], 1
    %379 = vsyncpa [#allocation4], 1

</llo_original>
